<compile_context>
chip_gen: v7x
topology: tpu7x:2x2x1
jax: 0.10.0
libtpu: 0.0.40
codegen_flags: <defaults>
</compile_context>

<pallas_src>
import functools
import math

import jax
import jax.numpy as jnp
from jax.experimental import pallas as pl
from jax.experimental.pallas import tpu as pltpu

LEAKY_SLOPE = 0.2
LOG_2PI = math.log(2.0 * math.pi)


# ------------------------------ Pallas kernel ------------------------------
def _adversary_kernel(x_ref, c_ref, hr_ref, out_ref, *, num_layers, latent):
    D = latent
    K = num_layers
    x = x_ref[...]                              # (D, B) f32, samples on lanes
    B = x.shape[1]

    # per-latent-dim rows, each (1, B)
    zrows = [x[d:d + 1, :] for d in range(D)]

    # --- log_det = q0.log_prob(x) ---
    sq = zrows[0] * zrows[0]
    for d in range(1, D):
        sq = sq + zrows[d] * zrows[d]
    log_det = (-0.5 * D * LOG_2PI) - 0.5 * sq   # (1, B)

    # --- forward_and_log_det through K planar (leaky-relu) flows ---
    ldf = jnp.zeros((1, B), jnp.float32)
    for k in range(K):                                        # static unroll
        w = [c_ref[k, d] for d in range(D)]                   # SMEM scalars
        uh = [c_ref[k, D + d] for d in range(D)]
        bk = c_ref[k, 2 * D + 0]
        log_pos = c_ref[k, 2 * D + 1]
        log_neg = c_ref[k, 2 * D + 2]
        lin = zrows[0] * w[0]
        for d in range(1, D):
            lin = lin + zrows[d] * w[d]
        lin = lin + bk                                        # (1, B)
        neg = lin < 0.0
        hp = jnp.where(neg, LEAKY_SLOPE, 1.0)
        h = hp * lin                                          # leaky_relu
        zrows = [zrows[d] + uh[d] * h for d in range(D)]
        ldf = ldf + jnp.where(neg, log_neg, log_pos)          # two-value trick

    # --- min/max normalization into the hyper_range box ---
    nrows = []
    ldn = jnp.zeros((1, 1), jnp.float32)
    for d in range(D):
        rng = hr_ref[0, d]                                    # param_range_d
        lo = hr_ref[1, d]                                     # range_min_d
        minv = jnp.min(zrows[d], axis=1, keepdims=True)       # (1,1)
        maxv = jnp.max(zrows[d], axis=1, keepdims=True)       # (1,1)
        inv_span = pl.reciprocal(maxv - minv, approx=False)   # shared recip
        nrows.append(rng * ((zrows[d] - minv) * inv_span) + lo)
        ldn = ldn + jnp.log(rng * inv_span)

    # --- forward_kld: invert flows (reverse order), loss = -mean(log_q) ---
    zr = [x[d:d + 1, :] for d in range(D)]
    log_q = jnp.zeros((1, B), jnp.float32)
    for k in reversed(range(K)):
        w = [c_ref[k, d] for d in range(D)]
        uh = [c_ref[k, D + d] for d in range(D)]
        bk = c_ref[k, 2 * D + 0]
        log_pos = c_ref[k, 2 * D + 1]
        log_neg = c_ref[k, 2 * D + 2]
        rpos = c_ref[k, 2 * D + 3]                            # 1/(1+wu)
        rneg = c_ref[k, 2 * D + 4]                            # 1/(1+wu*slope)
        lin = zr[0] * w[0]
        for d in range(1, D):
            lin = lin + zr[d] * w[d]
        lin = lin + bk
        neg = lin < 0.0
        s = jnp.where(neg, LEAKY_SLOPE, 1.0)
        rden = jnp.where(neg, rneg, rpos)                     # 1/denom, precomputed
        t = (s * lin) * rden
        zr = [zr[d] - uh[d] * t for d in range(D)]
        log_q = log_q - jnp.where(neg, log_neg, log_pos)      # -log|denom|

    sqr = zr[0] * zr[0]
    for d in range(1, D):
        sqr = sqr + zr[d] * zr[d]
    lp = (-0.5 * D * LOG_2PI) - 0.5 * sqr                     # (1, B)
    log_q = log_q + lp
    loss = -jnp.sum(log_q, axis=1, keepdims=True) / B         # (1, 1)

    # box condition on the first two latent dims (as in the torch code)
    lo0 = hr_ref[1, 0]
    hi0 = hr_ref[1, 0] + hr_ref[0, 0]
    lo1 = hr_ref[1, 1]
    hi1 = hr_ref[1, 1] + hr_ref[0, 1]
    cond = jnp.logical_and(jnp.logical_and(zr[0] >= lo0, zr[0] <= hi0),
                           jnp.logical_and(zr[1] >= lo1, zr[1] <= hi1))   # (1,B)
    cnt = jnp.sum(cond.astype(jnp.float32), axis=1, keepdims=True)        # (1,1)
    msum = jnp.sum(jnp.where(cond, lp, 0.0), axis=1, keepdims=True)
    mmean = msum / jnp.maximum(cnt, 1.0)
    rev = jnp.where(cnt > 0.0, -mmean + loss, jnp.zeros((1, 1), jnp.float32))

    # --- single consolidated lane-dense output: stats on sublanes, samples on lanes ---
    for d in range(D):
        out_ref[d:d + 1, :] = zrows[d]                # rows [0, D)       : z
        out_ref[D + d:D + d + 1, :] = nrows[d]        # rows [D, 2D)      : norm_z
    out_ref[2 * D + 0:2 * D + 1, :] = log_det         # row 2D            : log_det
    out_ref[2 * D + 1:2 * D + 2, :] = ldf             # row 2D+1          : log_det_forward
    out_ref[2 * D + 2:2 * D + 3, :] = jnp.broadcast_to(ldn, (1, B))   # log_det_norm
    out_ref[2 * D + 3:2 * D + 4, :] = jnp.broadcast_to(rev, (1, B))   # reverse_total


# ---------------------- wrapper-side flow constant hoist -----------------------
def _precompute_flow_constants(u, w, b):
    # normflows Planar constraint: w . u_hat >= -1 (guarantees invertibility)
    inner = jnp.sum(w * u, axis=-1, keepdims=True)                       # (K,1)
    sp = jnp.maximum(inner, 0.0) + jnp.log1p(jnp.exp(-jnp.abs(inner)))   # softplus
    u_hat = u + (sp - 1.0 - inner) * w / jnp.sum(w * w, axis=-1, keepdims=True)
    wu = jnp.sum(w * u_hat, axis=-1, keepdims=True)                      # (K,1)
    log_pos = jnp.log(jnp.abs(1.0 + wu))
    log_neg = jnp.log(jnp.abs(1.0 + LEAKY_SLOPE * wu))
    rpos = 1.0 / (1.0 + wu)
    rneg = 1.0 / (1.0 + LEAKY_SLOPE * wu)
    # columns: [w(0..D-1), u_hat(0..D-1), b, log_pos, log_neg, rpos, rneg]
    return jnp.concatenate([w, u_hat, b, log_pos, log_neg, rpos, rneg], axis=-1)


# --------------------------------- wrapper ---------------------------------
def distribution_adversary_forward(x, u, w, b, hyper_range, train=True):
    B, D = x.shape
    K = u.shape[0]
    assert D >= 2, "box condition uses the first two latent dims"

    x_t = x.T.astype(jnp.float32)                         # (D, B): samples on lanes
    consts = _precompute_flow_constants(u.astype(jnp.float32),
                                        w.astype(jnp.float32),
                                        b.astype(jnp.float32))   # (K, 2D+5)
    hr_t = hyper_range.T.astype(jnp.float32)              # (2, D): row0=range, row1=min

    out_rows = 2 * D + 4
    kernel = functools.partial(_adversary_kernel, num_layers=K, latent=D)

    out = pl.pallas_call(
        kernel,
        grid=(1,),
        in_specs=[
            pl.BlockSpec((D, B), lambda i: (0, 0)),                       # x (VMEM)
            pl.BlockSpec(memory_space=pltpu.MemorySpace.SMEM),            # flow consts
            pl.BlockSpec(memory_space=pltpu.MemorySpace.SMEM),            # hyper_range
        ],
        out_specs=pl.BlockSpec((out_rows, B), lambda i: (0, 0)),
        out_shape=jax.ShapeDtypeStruct((out_rows, B), jnp.float32),
        compiler_params=pltpu.CompilerParams(dimension_semantics=("arbitrary",)),
    )(x_t, consts, hr_t)

    norm_z = out[D:2 * D, :].T
    if not train:
        return norm_z
    z = out[0:D, :].T
    log_det = out[2 * D + 0, :]
    log_det_forward = out[2 * D + 1, :]
    log_det_norm = out[2 * D + 2, :]
    log_det_reverse_total = out[2 * D + 3, 0]
    return z, norm_z, log_det, log_det_forward, log_det_norm, log_det_reverse_total


# --------------------------- pure-JAX reference ----------------------------
def _reference(x, u, w, b, hyper_range):
    B, D = x.shape
    K = u.shape[0]

    def log_prob(v):
        return -0.5 * D * LOG_2PI - 0.5 * jnp.sum(v * v, axis=-1)

    def uhat(uk, wk):
        inner = jnp.dot(wk, uk)
        sp = jnp.maximum(inner, 0.0) + jnp.log1p(jnp.exp(-jnp.abs(inner)))
        return uk + (sp - 1.0 - inner) * wk / jnp.dot(wk, wk)

    log_det = log_prob(x)
    z = x
    ldf = jnp.zeros((B,), jnp.float32)
    for k in range(K):
        uk, wk, bk = u[k], w[k], b[k, 0]
        uh = uhat(uk, wk)
        lin = z @ wk + bk
        h = jnp.where(lin < 0, LEAKY_SLOPE * lin, lin)
        hp = jnp.where(lin < 0, LEAKY_SLOPE, 1.0)
        z = z + uh[None, :] * h[:, None]
        ldf = ldf + jnp.log(jnp.abs(1.0 + jnp.dot(wk, uh) * hp))

    minv, maxv = z.min(axis=0), z.max(axis=0)
    normalized = (z - minv) / (maxv - minv)
    norm_z = hyper_range[:, 0][None, :] * normalized + hyper_range[:, 1][None, :]
    ldn = jnp.full((B,), jnp.sum(jnp.log(hyper_range[:, 0] / (maxv - minv))))

    zr = x
    log_q = jnp.zeros((B,), jnp.float32)
    for k in reversed(range(K)):
        uk, wk, bk = u[k], w[k], b[k, 0]
        uh = uhat(uk, wk)
        lin = zr @ wk + bk
        s = jnp.where(lin < 0, LEAKY_SLOPE, 1.0)
        ueff = s[:, None] * uh[None, :]
        denom = 1.0 + ueff @ wk
        zr = zr - ueff * (lin / denom)[:, None]
        log_q = log_q - jnp.log(jnp.abs(denom))
    log_q = log_q + log_prob(zr)
    loss = -jnp.mean(log_q)
    a, bb = hyper_range[0, 1], hyper_range[0].sum()
    c, d = hyper_range[1, 1], hyper_range[1].sum()
    cond = (zr[:, 0] >= a) & (zr[:, 0] <= bb) & (zr[:, 1] >= c) & (zr[:, 1] <= d)
    cnt = cond.sum()
    mm = jnp.sum(jnp.where(cond, log_prob(zr), 0.0)) / jnp.maximum(cnt, 1)
    rev = jnp.where(cnt > 0, -mm + loss, 0.0)
    return z, norm_z, log_det, ldf, ldn, rev


# ----------------------------------- main -----------------------------------
if __name__ == "__main__":
    key = jax.random.PRNGKey(0)
    B, D, K = 8, 2, 3          # batch of task samples, latent_size=2, num_latent_layers=3
    kx, ku, kw = jax.random.split(key, 3)
    x = jax.random.normal(kx, (B, D), jnp.float32)

    # normflows Planar init: u ~ U(-sqrt(2), sqrt(2)), w ~ U(-sqrt(2/D), sqrt(2/D)), b = 0
    lim_u = math.sqrt(2.0)
    lim_w = math.sqrt(2.0 / D)
    u = jax.random.uniform(ku, (K, D), jnp.float32, -lim_u, lim_u)
    w = jax.random.uniform(kw, (K, D), jnp.float32, -lim_w, lim_w)
    b = jnp.zeros((K, 1), jnp.float32)

    # hyper_range: [param_range, range_min] per latent dim
    hyper_range = jnp.array([[4.9, 0.1], [3.0, -1.0]], jnp.float32)

    outs = distribution_adversary_forward(x, u, w, b, hyper_range, train=True)
    outs = jax.block_until_ready(outs)

    refs = _reference(x, u, w, b, hyper_range)
    names = ["z", "norm_z", "log_det", "log_det_forward",
             "log_det_norm", "log_det_reverse_total"]
    for name, o, r in zip(names, outs, refs):
        assert jnp.allclose(o, r, atol=1e-4, rtol=1e-4), (name, o, r)

    print("KERNEL_OK")
</pallas_src>

<mosaic_0001>
module attributes {stable_mosaic.version = 11 : i64} {
  func.func @_adversary_kernel(%arg0: i32, %arg1: memref<2x8xf32, #tpu.memory_space<vmem>>, %arg2: memref<3x9xf32, #tpu.memory_space<smem>>, %arg3: memref<2x2xf32, #tpu.memory_space<smem>>, %arg4: memref<8x8xf32, #tpu.memory_space<vmem>>) attributes {dimension_semantics = [#tpu.dimension_semantics<arbitrary>], iteration_bounds = array<i64: 1>, scalar_prefetch = 0 : i64, scratch_operands = 0 : i64, tpu.core_type = #tpu.core_type<tc>, window_params = [{pipeline_mode = #tpu.pipeline_mode<synchronous>, transform_indices = @transform_0, window_bounds = array<i64: 2, 8>}, {transform_indices = @transform_1, window_bounds = array<i64: 3, 9>}, {transform_indices = @transform_2, window_bounds = array<i64: 2, 2>}, {pipeline_mode = #tpu.pipeline_mode<synchronous>, transform_indices = @transform_3, window_bounds = array<i64: 8, 8>}]} {
    %c0 = arith.constant 0 : index
    %c0_0 = arith.constant 0 : index
    %0 = vector.load %arg1[%c0, %c0_0] : memref<2x8xf32, #tpu.memory_space<vmem>>, vector<2x8xf32>
    %1 = vector.extract_strided_slice %0 {offsets = [0, 0], sizes = [1, 8], strides = [1, 1]} : vector<2x8xf32> to vector<1x8xf32>
    %2 = vector.extract_strided_slice %0 {offsets = [1, 0], sizes = [1, 8], strides = [1, 1]} : vector<2x8xf32> to vector<1x8xf32>
    %3 = arith.mulf %1, %1 : vector<1x8xf32>
    %4 = arith.mulf %2, %2 : vector<1x8xf32>
    %5 = arith.addf %3, %4 : vector<1x8xf32>
    %cst = arith.constant 5.000000e-01 : f32
    %6 = vector.broadcast %cst : f32 to vector<1x8xf32>
    %7 = arith.mulf %6, %5 : vector<1x8xf32>
    %cst_1 = arith.constant -1.83787704 : f32
    %8 = vector.broadcast %cst_1 : f32 to vector<1x8xf32>
    %9 = arith.subf %8, %7 : vector<1x8xf32>
    %cst_2 = arith.constant 0.000000e+00 : f32
    %10 = vector.broadcast %cst_2 : f32 to vector<1x8xf32>
    %c0_3 = arith.constant 0 : index
    %c0_4 = arith.constant 0 : index
    %11 = memref.load %arg2[%c0_3, %c0_4] : memref<3x9xf32, #tpu.memory_space<smem>>
    %c0_5 = arith.constant 0 : index
    %c1 = arith.constant 1 : index
    %12 = memref.load %arg2[%c0_5, %c1] : memref<3x9xf32, #tpu.memory_space<smem>>
    %c0_6 = arith.constant 0 : index
    %c2 = arith.constant 2 : index
    %13 = memref.load %arg2[%c0_6, %c2] : memref<3x9xf32, #tpu.memory_space<smem>>
    %c0_7 = arith.constant 0 : index
    %c3 = arith.constant 3 : index
    %14 = memref.load %arg2[%c0_7, %c3] : memref<3x9xf32, #tpu.memory_space<smem>>
    %c0_8 = arith.constant 0 : index
    %c4 = arith.constant 4 : index
    %15 = memref.load %arg2[%c0_8, %c4] : memref<3x9xf32, #tpu.memory_space<smem>>
    %c0_9 = arith.constant 0 : index
    %c5 = arith.constant 5 : index
    %16 = memref.load %arg2[%c0_9, %c5] : memref<3x9xf32, #tpu.memory_space<smem>>
    %c0_10 = arith.constant 0 : index
    %c6 = arith.constant 6 : index
    %17 = memref.load %arg2[%c0_10, %c6] : memref<3x9xf32, #tpu.memory_space<smem>>
    %18 = vector.broadcast %11 : f32 to vector<1x8xf32>
    %19 = arith.mulf %1, %18 : vector<1x8xf32>
    %20 = vector.broadcast %12 : f32 to vector<1x8xf32>
    %21 = arith.mulf %2, %20 : vector<1x8xf32>
    %22 = arith.addf %19, %21 : vector<1x8xf32>
    %23 = vector.broadcast %15 : f32 to vector<1x8xf32>
    %24 = arith.addf %22, %23 : vector<1x8xf32>
    %cst_11 = arith.constant 0.000000e+00 : f32
    %25 = vector.broadcast %cst_11 : f32 to vector<1x8xf32>
    %26 = arith.cmpf olt, %24, %25 : vector<1x8xf32>
    %cst_12 = arith.constant 2.000000e-01 : f32
    %cst_13 = arith.constant 1.000000e+00 : f32
    %27 = vector.broadcast %cst_12 : f32 to vector<1x8xf32>
    %28 = vector.broadcast %cst_13 : f32 to vector<1x8xf32>
    %29 = arith.select %26, %27, %28 : vector<1x8xi1>, vector<1x8xf32>
    %30 = arith.mulf %29, %24 : vector<1x8xf32>
    %31 = vector.broadcast %13 : f32 to vector<1x8xf32>
    %32 = arith.mulf %31, %30 : vector<1x8xf32>
    %33 = arith.addf %1, %32 : vector<1x8xf32>
    %34 = vector.broadcast %14 : f32 to vector<1x8xf32>
    %35 = arith.mulf %34, %30 : vector<1x8xf32>
    %36 = arith.addf %2, %35 : vector<1x8xf32>
    %37 = vector.broadcast %17 : f32 to vector<1x8xf32>
    %38 = vector.broadcast %16 : f32 to vector<1x8xf32>
    %39 = arith.select %26, %37, %38 : vector<1x8xi1>, vector<1x8xf32>
    %40 = arith.addf %10, %39 : vector<1x8xf32>
    %c1_14 = arith.constant 1 : index
    %c0_15 = arith.constant 0 : index
    %41 = memref.load %arg2[%c1_14, %c0_15] : memref<3x9xf32, #tpu.memory_space<smem>>
    %c1_16 = arith.constant 1 : index
    %c1_17 = arith.constant 1 : index
    %42 = memref.load %arg2[%c1_16, %c1_17] : memref<3x9xf32, #tpu.memory_space<smem>>
    %c1_18 = arith.constant 1 : index
    %c2_19 = arith.constant 2 : index
    %43 = memref.load %arg2[%c1_18, %c2_19] : memref<3x9xf32, #tpu.memory_space<smem>>
    %c1_20 = arith.constant 1 : index
    %c3_21 = arith.constant 3 : index
    %44 = memref.load %arg2[%c1_20, %c3_21] : memref<3x9xf32, #tpu.memory_space<smem>>
    %c1_22 = arith.constant 1 : index
    %c4_23 = arith.constant 4 : index
    %45 = memref.load %arg2[%c1_22, %c4_23] : memref<3x9xf32, #tpu.memory_space<smem>>
    %c1_24 = arith.constant 1 : index
    %c5_25 = arith.constant 5 : index
    %46 = memref.load %arg2[%c1_24, %c5_25] : memref<3x9xf32, #tpu.memory_space<smem>>
    %c1_26 = arith.constant 1 : index
    %c6_27 = arith.constant 6 : index
    %47 = memref.load %arg2[%c1_26, %c6_27] : memref<3x9xf32, #tpu.memory_space<smem>>
    %48 = vector.broadcast %41 : f32 to vector<1x8xf32>
    %49 = arith.mulf %33, %48 : vector<1x8xf32>
    %50 = vector.broadcast %42 : f32 to vector<1x8xf32>
    %51 = arith.mulf %36, %50 : vector<1x8xf32>
    %52 = arith.addf %49, %51 : vector<1x8xf32>
    %53 = vector.broadcast %45 : f32 to vector<1x8xf32>
    %54 = arith.addf %52, %53 : vector<1x8xf32>
    %cst_28 = arith.constant 0.000000e+00 : f32
    %55 = vector.broadcast %cst_28 : f32 to vector<1x8xf32>
    %56 = arith.cmpf olt, %54, %55 : vector<1x8xf32>
    %cst_29 = arith.constant 2.000000e-01 : f32
    %cst_30 = arith.constant 1.000000e+00 : f32
    %57 = vector.broadcast %cst_29 : f32 to vector<1x8xf32>
    %58 = vector.broadcast %cst_30 : f32 to vector<1x8xf32>
    %59 = arith.select %56, %57, %58 : vector<1x8xi1>, vector<1x8xf32>
    %60 = arith.mulf %59, %54 : vector<1x8xf32>
    %61 = vector.broadcast %43 : f32 to vector<1x8xf32>
    %62 = arith.mulf %61, %60 : vector<1x8xf32>
    %63 = arith.addf %33, %62 : vector<1x8xf32>
    %64 = vector.broadcast %44 : f32 to vector<1x8xf32>
    %65 = arith.mulf %64, %60 : vector<1x8xf32>
    %66 = arith.addf %36, %65 : vector<1x8xf32>
    %67 = vector.broadcast %47 : f32 to vector<1x8xf32>
    %68 = vector.broadcast %46 : f32 to vector<1x8xf32>
    %69 = arith.select %56, %67, %68 : vector<1x8xi1>, vector<1x8xf32>
    %70 = arith.addf %40, %69 : vector<1x8xf32>
    %c2_31 = arith.constant 2 : index
    %c0_32 = arith.constant 0 : index
    %71 = memref.load %arg2[%c2_31, %c0_32] : memref<3x9xf32, #tpu.memory_space<smem>>
    %c2_33 = arith.constant 2 : index
    %c1_34 = arith.constant 1 : index
    %72 = memref.load %arg2[%c2_33, %c1_34] : memref<3x9xf32, #tpu.memory_space<smem>>
    %c2_35 = arith.constant 2 : index
    %c2_36 = arith.constant 2 : index
    %73 = memref.load %arg2[%c2_35, %c2_36] : memref<3x9xf32, #tpu.memory_space<smem>>
    %c2_37 = arith.constant 2 : index
    %c3_38 = arith.constant 3 : index
    %74 = memref.load %arg2[%c2_37, %c3_38] : memref<3x9xf32, #tpu.memory_space<smem>>
    %c2_39 = arith.constant 2 : index
    %c4_40 = arith.constant 4 : index
    %75 = memref.load %arg2[%c2_39, %c4_40] : memref<3x9xf32, #tpu.memory_space<smem>>
    %c2_41 = arith.constant 2 : index
    %c5_42 = arith.constant 5 : index
    %76 = memref.load %arg2[%c2_41, %c5_42] : memref<3x9xf32, #tpu.memory_space<smem>>
    %c2_43 = arith.constant 2 : index
    %c6_44 = arith.constant 6 : index
    %77 = memref.load %arg2[%c2_43, %c6_44] : memref<3x9xf32, #tpu.memory_space<smem>>
    %78 = vector.broadcast %71 : f32 to vector<1x8xf32>
    %79 = arith.mulf %63, %78 : vector<1x8xf32>
    %80 = vector.broadcast %72 : f32 to vector<1x8xf32>
    %81 = arith.mulf %66, %80 : vector<1x8xf32>
    %82 = arith.addf %79, %81 : vector<1x8xf32>
    %83 = vector.broadcast %75 : f32 to vector<1x8xf32>
    %84 = arith.addf %82, %83 : vector<1x8xf32>
    %cst_45 = arith.constant 0.000000e+00 : f32
    %85 = vector.broadcast %cst_45 : f32 to vector<1x8xf32>
    %86 = arith.cmpf olt, %84, %85 : vector<1x8xf32>
    %cst_46 = arith.constant 2.000000e-01 : f32
    %cst_47 = arith.constant 1.000000e+00 : f32
    %87 = vector.broadcast %cst_46 : f32 to vector<1x8xf32>
    %88 = vector.broadcast %cst_47 : f32 to vector<1x8xf32>
    %89 = arith.select %86, %87, %88 : vector<1x8xi1>, vector<1x8xf32>
    %90 = arith.mulf %89, %84 : vector<1x8xf32>
    %91 = vector.broadcast %73 : f32 to vector<1x8xf32>
    %92 = arith.mulf %91, %90 : vector<1x8xf32>
    %93 = arith.addf %63, %92 : vector<1x8xf32>
    %94 = vector.broadcast %74 : f32 to vector<1x8xf32>
    %95 = arith.mulf %94, %90 : vector<1x8xf32>
    %96 = arith.addf %66, %95 : vector<1x8xf32>
    %97 = vector.broadcast %77 : f32 to vector<1x8xf32>
    %98 = vector.broadcast %76 : f32 to vector<1x8xf32>
    %99 = arith.select %86, %97, %98 : vector<1x8xi1>, vector<1x8xf32>
    %100 = arith.addf %70, %99 : vector<1x8xf32>
    %cst_48 = arith.constant 0.000000e+00 : f32
    %101 = vector.broadcast %cst_48 : f32 to vector<1x1xf32>
    %c0_49 = arith.constant 0 : index
    %c0_50 = arith.constant 0 : index
    %102 = memref.load %arg3[%c0_49, %c0_50] : memref<2x2xf32, #tpu.memory_space<smem>>
    %c1_51 = arith.constant 1 : index
    %c0_52 = arith.constant 0 : index
    %103 = memref.load %arg3[%c1_51, %c0_52] : memref<2x2xf32, #tpu.memory_space<smem>>
    %cst_53 = arith.constant dense<0x7F800000> : vector<1xf32>
    %104 = vector.multi_reduction <minimumf>, %93, %cst_53 [1] : vector<1x8xf32> to vector<1xf32>
    %105 = vector.shape_cast %104 : vector<1xf32> to vector<1x1xf32>
    %cst_54 = arith.constant dense<0xFF800000> : vector<1xf32>
    %106 = vector.multi_reduction <maximumf>, %93, %cst_54 [1] : vector<1x8xf32> to vector<1xf32>
    %107 = vector.shape_cast %106 : vector<1xf32> to vector<1x1xf32>
    %108 = arith.subf %107, %105 : vector<1x1xf32>
    %109 = tpu.reciprocal %108 : vector<1x1xf32> -> vector<1x1xf32>
    %110 = vector.broadcast %105 : vector<1x1xf32> to vector<1x8xf32>
    %111 = arith.subf %93, %110 : vector<1x8xf32>
    %112 = vector.broadcast %109 : vector<1x1xf32> to vector<1x8xf32>
    %113 = arith.mulf %111, %112 : vector<1x8xf32>
    %114 = vector.broadcast %102 : f32 to vector<1x8xf32>
    %115 = arith.mulf %114, %113 : vector<1x8xf32>
    %116 = vector.broadcast %103 : f32 to vector<1x8xf32>
    %117 = arith.addf %115, %116 : vector<1x8xf32>
    %118 = vector.broadcast %102 : f32 to vector<1x1xf32>
    %119 = arith.mulf %118, %109 : vector<1x1xf32>
    %120 = math.log %119 : vector<1x1xf32>
    %121 = arith.addf %101, %120 : vector<1x1xf32>
    %c0_55 = arith.constant 0 : index
    %c1_56 = arith.constant 1 : index
    %122 = memref.load %arg3[%c0_55, %c1_56] : memref<2x2xf32, #tpu.memory_space<smem>>
    %c1_57 = arith.constant 1 : index
    %c1_58 = arith.constant 1 : index
    %123 = memref.load %arg3[%c1_57, %c1_58] : memref<2x2xf32, #tpu.memory_space<smem>>
    %cst_59 = arith.constant dense<0x7F800000> : vector<1xf32>
    %124 = vector.multi_reduction <minimumf>, %96, %cst_59 [1] : vector<1x8xf32> to vector<1xf32>
    %125 = vector.shape_cast %124 : vector<1xf32> to vector<1x1xf32>
    %cst_60 = arith.constant dense<0xFF800000> : vector<1xf32>
    %126 = vector.multi_reduction <maximumf>, %96, %cst_60 [1] : vector<1x8xf32> to vector<1xf32>
    %127 = vector.shape_cast %126 : vector<1xf32> to vector<1x1xf32>
    %128 = arith.subf %127, %125 : vector<1x1xf32>
    %129 = tpu.reciprocal %128 : vector<1x1xf32> -> vector<1x1xf32>
    %130 = vector.broadcast %125 : vector<1x1xf32> to vector<1x8xf32>
    %131 = arith.subf %96, %130 : vector<1x8xf32>
    %132 = vector.broadcast %129 : vector<1x1xf32> to vector<1x8xf32>
    %133 = arith.mulf %131, %132 : vector<1x8xf32>
    %134 = vector.broadcast %122 : f32 to vector<1x8xf32>
    %135 = arith.mulf %134, %133 : vector<1x8xf32>
    %136 = vector.broadcast %123 : f32 to vector<1x8xf32>
    %137 = arith.addf %135, %136 : vector<1x8xf32>
    %138 = vector.broadcast %122 : f32 to vector<1x1xf32>
    %139 = arith.mulf %138, %129 : vector<1x1xf32>
    %140 = math.log %139 : vector<1x1xf32>
    %141 = arith.addf %121, %140 : vector<1x1xf32>
    %142 = vector.extract_strided_slice %0 {offsets = [0, 0], sizes = [1, 8], strides = [1, 1]} : vector<2x8xf32> to vector<1x8xf32>
    %143 = vector.extract_strided_slice %0 {offsets = [1, 0], sizes = [1, 8], strides = [1, 1]} : vector<2x8xf32> to vector<1x8xf32>
    %cst_61 = arith.constant 0.000000e+00 : f32
    %144 = vector.broadcast %cst_61 : f32 to vector<1x8xf32>
    %c2_62 = arith.constant 2 : index
    %c0_63 = arith.constant 0 : index
    %145 = memref.load %arg2[%c2_62, %c0_63] : memref<3x9xf32, #tpu.memory_space<smem>>
    %c2_64 = arith.constant 2 : index
    %c1_65 = arith.constant 1 : index
    %146 = memref.load %arg2[%c2_64, %c1_65] : memref<3x9xf32, #tpu.memory_space<smem>>
    %c2_66 = arith.constant 2 : index
    %c2_67 = arith.constant 2 : index
    %147 = memref.load %arg2[%c2_66, %c2_67] : memref<3x9xf32, #tpu.memory_space<smem>>
    %c2_68 = arith.constant 2 : index
    %c3_69 = arith.constant 3 : index
    %148 = memref.load %arg2[%c2_68, %c3_69] : memref<3x9xf32, #tpu.memory_space<smem>>
    %c2_70 = arith.constant 2 : index
    %c4_71 = arith.constant 4 : index
    %149 = memref.load %arg2[%c2_70, %c4_71] : memref<3x9xf32, #tpu.memory_space<smem>>
    %c2_72 = arith.constant 2 : index
    %c5_73 = arith.constant 5 : index
    %150 = memref.load %arg2[%c2_72, %c5_73] : memref<3x9xf32, #tpu.memory_space<smem>>
    %c2_74 = arith.constant 2 : index
    %c6_75 = arith.constant 6 : index
    %151 = memref.load %arg2[%c2_74, %c6_75] : memref<3x9xf32, #tpu.memory_space<smem>>
    %c2_76 = arith.constant 2 : index
    %c7 = arith.constant 7 : index
    %152 = memref.load %arg2[%c2_76, %c7] : memref<3x9xf32, #tpu.memory_space<smem>>
    %c2_77 = arith.constant 2 : index
    %c8 = arith.constant 8 : index
    %153 = memref.load %arg2[%c2_77, %c8] : memref<3x9xf32, #tpu.memory_space<smem>>
    %154 = vector.broadcast %145 : f32 to vector<1x8xf32>
    %155 = arith.mulf %142, %154 : vector<1x8xf32>
    %156 = vector.broadcast %146 : f32 to vector<1x8xf32>
    %157 = arith.mulf %143, %156 : vector<1x8xf32>
    %158 = arith.addf %155, %157 : vector<1x8xf32>
    %159 = vector.broadcast %149 : f32 to vector<1x8xf32>
    %160 = arith.addf %158, %159 : vector<1x8xf32>
    %cst_78 = arith.constant 0.000000e+00 : f32
    %161 = vector.broadcast %cst_78 : f32 to vector<1x8xf32>
    %162 = arith.cmpf olt, %160, %161 : vector<1x8xf32>
    %cst_79 = arith.constant 2.000000e-01 : f32
    %cst_80 = arith.constant 1.000000e+00 : f32
    %163 = vector.broadcast %cst_79 : f32 to vector<1x8xf32>
    %164 = vector.broadcast %cst_80 : f32 to vector<1x8xf32>
    %165 = arith.select %162, %163, %164 : vector<1x8xi1>, vector<1x8xf32>
    %166 = vector.broadcast %153 : f32 to vector<1x8xf32>
    %167 = vector.broadcast %152 : f32 to vector<1x8xf32>
    %168 = arith.select %162, %166, %167 : vector<1x8xi1>, vector<1x8xf32>
    %169 = arith.mulf %165, %160 : vector<1x8xf32>
    %170 = arith.mulf %169, %168 : vector<1x8xf32>
    %171 = vector.broadcast %147 : f32 to vector<1x8xf32>
    %172 = arith.mulf %171, %170 : vector<1x8xf32>
    %173 = arith.subf %142, %172 : vector<1x8xf32>
    %174 = vector.broadcast %148 : f32 to vector<1x8xf32>
    %175 = arith.mulf %174, %170 : vector<1x8xf32>
    %176 = arith.subf %143, %175 : vector<1x8xf32>
    %177 = vector.broadcast %151 : f32 to vector<1x8xf32>
    %178 = vector.broadcast %150 : f32 to vector<1x8xf32>
    %179 = arith.select %162, %177, %178 : vector<1x8xi1>, vector<1x8xf32>
    %180 = arith.subf %144, %179 : vector<1x8xf32>
    %c1_81 = arith.constant 1 : index
    %c0_82 = arith.constant 0 : index
    %181 = memref.load %arg2[%c1_81, %c0_82] : memref<3x9xf32, #tpu.memory_space<smem>>
    %c1_83 = arith.constant 1 : index
    %c1_84 = arith.constant 1 : index
    %182 = memref.load %arg2[%c1_83, %c1_84] : memref<3x9xf32, #tpu.memory_space<smem>>
    %c1_85 = arith.constant 1 : index
    %c2_86 = arith.constant 2 : index
    %183 = memref.load %arg2[%c1_85, %c2_86] : memref<3x9xf32, #tpu.memory_space<smem>>
    %c1_87 = arith.constant 1 : index
    %c3_88 = arith.constant 3 : index
    %184 = memref.load %arg2[%c1_87, %c3_88] : memref<3x9xf32, #tpu.memory_space<smem>>
    %c1_89 = arith.constant 1 : index
    %c4_90 = arith.constant 4 : index
    %185 = memref.load %arg2[%c1_89, %c4_90] : memref<3x9xf32, #tpu.memory_space<smem>>
    %c1_91 = arith.constant 1 : index
    %c5_92 = arith.constant 5 : index
    %186 = memref.load %arg2[%c1_91, %c5_92] : memref<3x9xf32, #tpu.memory_space<smem>>
    %c1_93 = arith.constant 1 : index
    %c6_94 = arith.constant 6 : index
    %187 = memref.load %arg2[%c1_93, %c6_94] : memref<3x9xf32, #tpu.memory_space<smem>>
    %c1_95 = arith.constant 1 : index
    %c7_96 = arith.constant 7 : index
    %188 = memref.load %arg2[%c1_95, %c7_96] : memref<3x9xf32, #tpu.memory_space<smem>>
    %c1_97 = arith.constant 1 : index
    %c8_98 = arith.constant 8 : index
    %189 = memref.load %arg2[%c1_97, %c8_98] : memref<3x9xf32, #tpu.memory_space<smem>>
    %190 = vector.broadcast %181 : f32 to vector<1x8xf32>
    %191 = arith.mulf %173, %190 : vector<1x8xf32>
    %192 = vector.broadcast %182 : f32 to vector<1x8xf32>
    %193 = arith.mulf %176, %192 : vector<1x8xf32>
    %194 = arith.addf %191, %193 : vector<1x8xf32>
    %195 = vector.broadcast %185 : f32 to vector<1x8xf32>
    %196 = arith.addf %194, %195 : vector<1x8xf32>
    %cst_99 = arith.constant 0.000000e+00 : f32
    %197 = vector.broadcast %cst_99 : f32 to vector<1x8xf32>
    %198 = arith.cmpf olt, %196, %197 : vector<1x8xf32>
    %cst_100 = arith.constant 2.000000e-01 : f32
    %cst_101 = arith.constant 1.000000e+00 : f32
    %199 = vector.broadcast %cst_100 : f32 to vector<1x8xf32>
    %200 = vector.broadcast %cst_101 : f32 to vector<1x8xf32>
    %201 = arith.select %198, %199, %200 : vector<1x8xi1>, vector<1x8xf32>
    %202 = vector.broadcast %189 : f32 to vector<1x8xf32>
    %203 = vector.broadcast %188 : f32 to vector<1x8xf32>
    %204 = arith.select %198, %202, %203 : vector<1x8xi1>, vector<1x8xf32>
    %205 = arith.mulf %201, %196 : vector<1x8xf32>
    %206 = arith.mulf %205, %204 : vector<1x8xf32>
    %207 = vector.broadcast %183 : f32 to vector<1x8xf32>
    %208 = arith.mulf %207, %206 : vector<1x8xf32>
    %209 = arith.subf %173, %208 : vector<1x8xf32>
    %210 = vector.broadcast %184 : f32 to vector<1x8xf32>
    %211 = arith.mulf %210, %206 : vector<1x8xf32>
    %212 = arith.subf %176, %211 : vector<1x8xf32>
    %213 = vector.broadcast %187 : f32 to vector<1x8xf32>
    %214 = vector.broadcast %186 : f32 to vector<1x8xf32>
    %215 = arith.select %198, %213, %214 : vector<1x8xi1>, vector<1x8xf32>
    %216 = arith.subf %180, %215 : vector<1x8xf32>
    %c0_102 = arith.constant 0 : index
    %c0_103 = arith.constant 0 : index
    %217 = memref.load %arg2[%c0_102, %c0_103] : memref<3x9xf32, #tpu.memory_space<smem>>
    %c0_104 = arith.constant 0 : index
    %c1_105 = arith.constant 1 : index
    %218 = memref.load %arg2[%c0_104, %c1_105] : memref<3x9xf32, #tpu.memory_space<smem>>
    %c0_106 = arith.constant 0 : index
    %c2_107 = arith.constant 2 : index
    %219 = memref.load %arg2[%c0_106, %c2_107] : memref<3x9xf32, #tpu.memory_space<smem>>
    %c0_108 = arith.constant 0 : index
    %c3_109 = arith.constant 3 : index
    %220 = memref.load %arg2[%c0_108, %c3_109] : memref<3x9xf32, #tpu.memory_space<smem>>
    %c0_110 = arith.constant 0 : index
    %c4_111 = arith.constant 4 : index
    %221 = memref.load %arg2[%c0_110, %c4_111] : memref<3x9xf32, #tpu.memory_space<smem>>
    %c0_112 = arith.constant 0 : index
    %c5_113 = arith.constant 5 : index
    %222 = memref.load %arg2[%c0_112, %c5_113] : memref<3x9xf32, #tpu.memory_space<smem>>
    %c0_114 = arith.constant 0 : index
    %c6_115 = arith.constant 6 : index
    %223 = memref.load %arg2[%c0_114, %c6_115] : memref<3x9xf32, #tpu.memory_space<smem>>
    %c0_116 = arith.constant 0 : index
    %c7_117 = arith.constant 7 : index
    %224 = memref.load %arg2[%c0_116, %c7_117] : memref<3x9xf32, #tpu.memory_space<smem>>
    %c0_118 = arith.constant 0 : index
    %c8_119 = arith.constant 8 : index
    %225 = memref.load %arg2[%c0_118, %c8_119] : memref<3x9xf32, #tpu.memory_space<smem>>
    %226 = vector.broadcast %217 : f32 to vector<1x8xf32>
    %227 = arith.mulf %209, %226 : vector<1x8xf32>
    %228 = vector.broadcast %218 : f32 to vector<1x8xf32>
    %229 = arith.mulf %212, %228 : vector<1x8xf32>
    %230 = arith.addf %227, %229 : vector<1x8xf32>
    %231 = vector.broadcast %221 : f32 to vector<1x8xf32>
    %232 = arith.addf %230, %231 : vector<1x8xf32>
    %cst_120 = arith.constant 0.000000e+00 : f32
    %233 = vector.broadcast %cst_120 : f32 to vector<1x8xf32>
    %234 = arith.cmpf olt, %232, %233 : vector<1x8xf32>
    %cst_121 = arith.constant 2.000000e-01 : f32
    %cst_122 = arith.constant 1.000000e+00 : f32
    %235 = vector.broadcast %cst_121 : f32 to vector<1x8xf32>
    %236 = vector.broadcast %cst_122 : f32 to vector<1x8xf32>
    %237 = arith.select %234, %235, %236 : vector<1x8xi1>, vector<1x8xf32>
    %238 = vector.broadcast %225 : f32 to vector<1x8xf32>
    %239 = vector.broadcast %224 : f32 to vector<1x8xf32>
    %240 = arith.select %234, %238, %239 : vector<1x8xi1>, vector<1x8xf32>
    %241 = arith.mulf %237, %232 : vector<1x8xf32>
    %242 = arith.mulf %241, %240 : vector<1x8xf32>
    %243 = vector.broadcast %219 : f32 to vector<1x8xf32>
    %244 = arith.mulf %243, %242 : vector<1x8xf32>
    %245 = arith.subf %209, %244 : vector<1x8xf32>
    %246 = vector.broadcast %220 : f32 to vector<1x8xf32>
    %247 = arith.mulf %246, %242 : vector<1x8xf32>
    %248 = arith.subf %212, %247 : vector<1x8xf32>
    %249 = vector.broadcast %223 : f32 to vector<1x8xf32>
    %250 = vector.broadcast %222 : f32 to vector<1x8xf32>
    %251 = arith.select %234, %249, %250 : vector<1x8xi1>, vector<1x8xf32>
    %252 = arith.subf %216, %251 : vector<1x8xf32>
    %253 = arith.mulf %245, %245 : vector<1x8xf32>
    %254 = arith.mulf %248, %248 : vector<1x8xf32>
    %255 = arith.addf %253, %254 : vector<1x8xf32>
    %cst_123 = arith.constant 5.000000e-01 : f32
    %256 = vector.broadcast %cst_123 : f32 to vector<1x8xf32>
    %257 = arith.mulf %256, %255 : vector<1x8xf32>
    %cst_124 = arith.constant -1.83787704 : f32
    %258 = vector.broadcast %cst_124 : f32 to vector<1x8xf32>
    %259 = arith.subf %258, %257 : vector<1x8xf32>
    %260 = arith.addf %252, %259 : vector<1x8xf32>
    %cst_125 = arith.constant dense<0.000000e+00> : vector<1xf32>
    %261 = vector.multi_reduction <add>, %260, %cst_125 [1] : vector<1x8xf32> to vector<1xf32>
    %262 = vector.shape_cast %261 : vector<1xf32> to vector<1x1xf32>
    %cst_126 = arith.constant 0.000000e+00 : f32
    %263 = vector.broadcast %cst_126 : f32 to vector<1x1xf32>
    %264 = arith.subf %263, %262 : vector<1x1xf32>
    %cst_127 = arith.constant 8.000000e+00 : f32
    %265 = vector.broadcast %cst_127 : f32 to vector<1x1xf32>
    %266 = arith.divf %264, %265 : vector<1x1xf32>
    %c1_128 = arith.constant 1 : index
    %c0_129 = arith.constant 0 : index
    %267 = memref.load %arg3[%c1_128, %c0_129] : memref<2x2xf32, #tpu.memory_space<smem>>
    %c1_130 = arith.constant 1 : index
    %c0_131 = arith.constant 0 : index
    %268 = memref.load %arg3[%c1_130, %c0_131] : memref<2x2xf32, #tpu.memory_space<smem>>
    %c0_132 = arith.constant 0 : index
    %c0_133 = arith.constant 0 : index
    %269 = memref.load %arg3[%c0_132, %c0_133] : memref<2x2xf32, #tpu.memory_space<smem>>
    %270 = arith.addf %268, %269 : f32
    %c1_134 = arith.constant 1 : index
    %c1_135 = arith.constant 1 : index
    %271 = memref.load %arg3[%c1_134, %c1_135] : memref<2x2xf32, #tpu.memory_space<smem>>
    %c1_136 = arith.constant 1 : index
    %c1_137 = arith.constant 1 : index
    %272 = memref.load %arg3[%c1_136, %c1_137] : memref<2x2xf32, #tpu.memory_space<smem>>
    %c0_138 = arith.constant 0 : index
    %c1_139 = arith.constant 1 : index
    %273 = memref.load %arg3[%c0_138, %c1_139] : memref<2x2xf32, #tpu.memory_space<smem>>
    %274 = arith.addf %272, %273 : f32
    %275 = vector.broadcast %267 : f32 to vector<1x8xf32>
    %276 = arith.cmpf oge, %245, %275 : vector<1x8xf32>
    %277 = vector.broadcast %270 : f32 to vector<1x8xf32>
    %278 = arith.cmpf ole, %245, %277 : vector<1x8xf32>
    %279 = arith.andi %276, %278 : vector<1x8xi1>
    %280 = vector.broadcast %271 : f32 to vector<1x8xf32>
    %281 = arith.cmpf oge, %248, %280 : vector<1x8xf32>
    %282 = vector.broadcast %274 : f32 to vector<1x8xf32>
    %283 = arith.cmpf ole, %248, %282 : vector<1x8xf32>
    %284 = arith.andi %281, %283 : vector<1x8xi1>
    %285 = arith.andi %279, %284 : vector<1x8xi1>
    %286 = arith.extui %285 : vector<1x8xi1> to vector<1x8xi32>
    %287 = arith.sitofp %286 : vector<1x8xi32> to vector<1x8xf32>
    %cst_140 = arith.constant dense<0.000000e+00> : vector<1xf32>
    %288 = vector.multi_reduction <add>, %287, %cst_140 [1] : vector<1x8xf32> to vector<1xf32>
    %289 = vector.shape_cast %288 : vector<1xf32> to vector<1x1xf32>
    %cst_141 = arith.constant 0.000000e+00 : f32
    %290 = vector.broadcast %cst_141 : f32 to vector<1x8xf32>
    %291 = arith.select %285, %259, %290 : vector<1x8xi1>, vector<1x8xf32>
    %cst_142 = arith.constant dense<0.000000e+00> : vector<1xf32>
    %292 = vector.multi_reduction <add>, %291, %cst_142 [1] : vector<1x8xf32> to vector<1xf32>
    %293 = vector.shape_cast %292 : vector<1xf32> to vector<1x1xf32>
    %cst_143 = arith.constant 1.000000e+00 : f32
    %294 = vector.broadcast %cst_143 : f32 to vector<1x1xf32>
    %295 = arith.maximumf %289, %294 : vector<1x1xf32>
    %296 = arith.divf %293, %295 : vector<1x1xf32>
    %cst_144 = arith.constant 0.000000e+00 : f32
    %297 = vector.broadcast %cst_144 : f32 to vector<1x1xf32>
    %298 = arith.cmpf ogt, %289, %297 : vector<1x1xf32>
    %cst_145 = arith.constant 0.000000e+00 : f32
    %299 = vector.broadcast %cst_145 : f32 to vector<1x1xf32>
    %300 = arith.subf %299, %296 : vector<1x1xf32>
    %301 = arith.addf %300, %266 : vector<1x1xf32>
    %cst_146 = arith.constant 0.000000e+00 : f32
    %302 = vector.broadcast %cst_146 : f32 to vector<1x1xf32>
    %303 = arith.select %298, %301, %302 : vector<1x1xi1>, vector<1x1xf32>
    %c0_147 = arith.constant 0 : index
    %c0_148 = arith.constant 0 : index
    %304 = vector.load %arg4[%c0_147, %c0_148] : memref<8x8xf32, #tpu.memory_space<vmem>>, vector<1x8xf32>
    tpu.vector_store %arg4[%c0_147, %c0_148], %93 {strides = array<i32>} : memref<8x8xf32, #tpu.memory_space<vmem>>, vector<1x8xf32>,
    %c2_149 = arith.constant 2 : index
    %c0_150 = arith.constant 0 : index
    %305 = vector.load %arg4[%c2_149, %c0_150] : memref<8x8xf32, #tpu.memory_space<vmem>>, vector<1x8xf32>
    tpu.vector_store %arg4[%c2_149, %c0_150], %117 {strides = array<i32>} : memref<8x8xf32, #tpu.memory_space<vmem>>, vector<1x8xf32>,
    %c1_151 = arith.constant 1 : index
    %c0_152 = arith.constant 0 : index
    %306 = vector.load %arg4[%c1_151, %c0_152] : memref<8x8xf32, #tpu.memory_space<vmem>>, vector<1x8xf32>
    tpu.vector_store %arg4[%c1_151, %c0_152], %96 {strides = array<i32>} : memref<8x8xf32, #tpu.memory_space<vmem>>, vector<1x8xf32>,
    %c3_153 = arith.constant 3 : index
    %c0_154 = arith.constant 0 : index
    %307 = vector.load %arg4[%c3_153, %c0_154] : memref<8x8xf32, #tpu.memory_space<vmem>>, vector<1x8xf32>
    tpu.vector_store %arg4[%c3_153, %c0_154], %137 {strides = array<i32>} : memref<8x8xf32, #tpu.memory_space<vmem>>, vector<1x8xf32>,
    %c4_155 = arith.constant 4 : index
    %c0_156 = arith.constant 0 : index
    %308 = vector.load %arg4[%c4_155, %c0_156] : memref<8x8xf32, #tpu.memory_space<vmem>>, vector<1x8xf32>
    tpu.vector_store %arg4[%c4_155, %c0_156], %9 {strides = array<i32>} : memref<8x8xf32, #tpu.memory_space<vmem>>, vector<1x8xf32>,
    %c5_157 = arith.constant 5 : index
    %c0_158 = arith.constant 0 : index
    %309 = vector.load %arg4[%c5_157, %c0_158] : memref<8x8xf32, #tpu.memory_space<vmem>>, vector<1x8xf32>
    tpu.vector_store %arg4[%c5_157, %c0_158], %100 {strides = array<i32>} : memref<8x8xf32, #tpu.memory_space<vmem>>, vector<1x8xf32>,
    %310 = vector.shape_cast %141 : vector<1x1xf32> to vector<1x1xf32>
    %311 = vector.broadcast %310 : vector<1x1xf32> to vector<1x8xf32>
    %c6_159 = arith.constant 6 : index
    %c0_160 = arith.constant 0 : index
    %312 = vector.load %arg4[%c6_159, %c0_160] : memref<8x8xf32, #tpu.memory_space<vmem>>, vector<1x8xf32>
    tpu.vector_store %arg4[%c6_159, %c0_160], %311 {strides = array<i32>} : memref<8x8xf32, #tpu.memory_space<vmem>>, vector<1x8xf32>,
    %313 = vector.shape_cast %303 : vector<1x1xf32> to vector<1x1xf32>
    %314 = vector.broadcast %313 : vector<1x1xf32> to vector<1x8xf32>
    %c7_161 = arith.constant 7 : index
    %c0_162 = arith.constant 0 : index
    %315 = vector.load %arg4[%c7_161, %c0_162] : memref<8x8xf32, #tpu.memory_space<vmem>>, vector<1x8xf32>
    tpu.vector_store %arg4[%c7_161, %c0_162], %314 {strides = array<i32>} : memref<8x8xf32, #tpu.memory_space<vmem>>, vector<1x8xf32>,
    return
  }
  func.func @transform_0(%arg0: i32) -> (i32, i32) {
    %c0_i32 = arith.constant 0 : i32
    %c0_i32_0 = arith.constant 0 : i32
    %c0_i32_1 = arith.constant 0 : i32
    return %c0_i32, %c0_i32_0 : i32, i32
  }
  func.func @transform_1(%arg0: i32) -> (i32, i32) {
    %c0_i32 = arith.constant 0 : i32
    %c0_i32_0 = arith.constant 0 : i32
    %c0_i32_1 = arith.constant 0 : i32
    return %c0_i32, %c0_i32_0 : i32, i32
  }
  func.func @transform_2(%arg0: i32) -> (i32, i32) {
    %c0_i32 = arith.constant 0 : i32
    %c0_i32_0 = arith.constant 0 : i32
    %c0_i32_1 = arith.constant 0 : i32
    return %c0_i32, %c0_i32_0 : i32, i32
  }
  func.func @transform_3(%arg0: i32) -> (i32, i32) {
    %c0_i32 = arith.constant 0 : i32
    %c0_i32_0 = arith.constant 0 : i32
    %c0_i32_1 = arith.constant 0 : i32
    return %c0_i32, %c0_i32_0 : i32, i32
  }
}

</mosaic_0001>

<llo_original>
// kernel: tpu_custom_call.1
$region0: #{tpu_custom_call.1}
  #allocation0 [shape = 'u32[]', space=smem, size = 0x4, offset = 0x4, fixed_abs, tag = 'smem constant byte address 0x4 - core index']
  #allocation1 [shape = 'u32[144,128]{1,0:T(1,128)}', space=vmem, size = 0x12000, scoped, tag = 'internal scratch']
  %s0 = inlined_call_operand.hbm [shape: f32[2,8], index: 0, kind: input, shape index: {}]
  %s1 = inlined_call_operand.hbm [shape: f32[3,9], index: 1, kind: input, shape index: {}]
  %s2 = inlined_call_operand.vmem [shape: f32[2,2], index: 2, kind: input, shape index: {}]
  %s3 = inlined_call_operand.hbm [shape: f32[8,8], index: 3, kind: output, shape index: {}]
  %s4 = sld [smem:[#allocation0]]
  $region34: #{tpu_custom_call.1} parent=0
    _
  %s6 = ssub.s32 1, %s4
  %s7 = scalar_select 0, %s6, %s4
  $region1: #{tpu_custom_call.1} parent=0
    #allocation2 [shape = 'u8[1024]{0}', space=vmem, size = 0x400, scoped, tag = 'input window, operand 0, single buffered']
    #allocation3 [shape = 's32[1]{0}', space=sflag, size = 0x4, scoped, tag = 'scoped memory for tpu_custom_call.1']
    #allocation4 [shape = 's32[1]{0}', space=sflag, size = 0x4, scoped, tag = 'scoped memory for tpu_custom_call.1']
    #allocation5 [shape = 's32[1]{0}', space=sflag, size = 0x4, scoped, tag = 'scoped memory for tpu_custom_call.1']
    #allocation6 [shape = 's32[1]{0}', space=sflag, size = 0x4, scoped, tag = 'scoped memory for tpu_custom_call.1']
    #allocation7 [shape = 'u8[2048]{0}', space=smem, size = 0x800, scoped, tag = 'input window, operand 1, single buffered']
    #allocation8 [shape = 'u8[1024]{0}', space=smem, size = 0x400, scoped, tag = 'input window, operand 2, single buffered']
    #allocation9 [shape = 'u8[4096]{0}', space=vmem, size = 0x1000, scoped, tag = 'output window, operand 0, single buffered']
    %8 = vsyncpa [#allocation3], 0
    %9 = vsyncpa [#allocation5], 0
    %10 = vsyncpa [#allocation6], 0
    %11 = vsyncpa [#allocation4], 0
    // Predicated region
    $region2: #{tpu_custom_call.1} parent=1 // pred_check
      _
    $region3: #{tpu_custom_call.1} parent=1 // pred_check_branch
      %13 = sbr.rel (0) target = $region5
    $region4: #{tpu_custom_call.1} parent=1 // pred_region
      %s15 = ssub.s32 32, 32
      %16 = vsyncadd [#allocation3], %s15
      %s18 = sshll.u32 [#allocation2], 4
      %s19 = int_to_ptr.vmem [resolvable:$true] %s18
      %21 = dma.hbm_to_vmem [thread:$0]  %s0, 32, %s19, [#allocation3]
    $region5: #{tpu_custom_call.1} parent=1 // pred_fallthru
      _
    // Predicated region
    $region6: #{tpu_custom_call.1} parent=1 // pred_check
      _
    $region7: #{tpu_custom_call.1} parent=1 // pred_check_branch
      %23 = sbr.rel (0) target = $region9
    $region8: #{tpu_custom_call.1} parent=1 // pred_region
      %s25 = ssub.s32 64, 64
      %26 = vsyncadd [#allocation5], %s25
      %29 = dma.hbm_to_smem %s1, 64, [#allocation7], [#allocation5]
    $region9: #{tpu_custom_call.1} parent=1 // pred_fallthru
      _
    // Predicated region
    $region10: #{tpu_custom_call.1} parent=1 // pred_check
      _
    $region11: #{tpu_custom_call.1} parent=1 // pred_check_branch
      %31 = sbr.rel (0) target = $region13
    $region12: #{tpu_custom_call.1} parent=1 // pred_region
      %s33 = ssub.s32 32, 32
      %34 = vsyncadd [#allocation6], %s33
      %s36 = sshll.u32 %s2, 4
      %s37 = int_to_ptr.vmem [resolvable:$true] %s36
      %39 = dma.vmem_to_smem %s37, 32, [#allocation8], [#allocation6]
    $region13: #{tpu_custom_call.1} parent=1 // pred_fallthru
      _
    // Predicated region
    $region14: #{tpu_custom_call.1} parent=1 // pred_check
      _
    $region15: #{tpu_custom_call.1} parent=1 // pred_check_branch
      %41 = sbr.rel (0) target = $region17
    $region16: #{tpu_custom_call.1} parent=1 // pred_region
      %42 = dma.done [#allocation3], 32
    $region17: #{tpu_custom_call.1} parent=1 // pred_fallthru
      _
    // Predicated region
    $region18: #{tpu_custom_call.1} parent=1 // pred_check
      _
    $region19: #{tpu_custom_call.1} parent=1 // pred_check_branch
      %44 = sbr.rel (0) target = $region21
    $region20: #{tpu_custom_call.1} parent=1 // pred_region
      %45 = dma.done [#allocation5], 64
    $region21: #{tpu_custom_call.1} parent=1 // pred_fallthru
      _
    // Predicated region
    $region22: #{tpu_custom_call.1} parent=1 // pred_check
      _
    $region23: #{tpu_custom_call.1} parent=1 // pred_check_branch
      %47 = sbr.rel (0) target = $region25
    $region24: #{tpu_custom_call.1} parent=1 // pred_region
      %48 = dma.done [#allocation6], 32
    $region25: #{tpu_custom_call.1} parent=1 // pred_fallthru
      _
    %49 = sfence
    %v50 = vld [vmem:[#allocation2] sm:$0x3]
    %v51 = vmul.f32 %v50, %v50
    %v53 = vrot.slane %v51, 1
    %v55 = vadd.f32 %v51, %v53
    %v56 = vmul.f32 %v55, 0.5
    %v57 = vsub.f32 -1.837877, %v56
    %s58 = sld [smem:[#allocation7]]
    %s59 = sld [smem:[#allocation7 + $0x1]]
    %s60 = sld [smem:[#allocation7 + $0x2]]
    %s61 = sld [smem:[#allocation7 + $0x3]]
    %s62 = sld [smem:[#allocation7 + $0x4]]
    %s63 = sld [smem:[#allocation7 + $0x5]]
    %s64 = sld [smem:[#allocation7 + $0x6]]
    %v65 = vstv %s58
    %v66 = vmul.f32 %v50, %v65
    %v67 = vstv %s59
    %v68 = vmul.f32 %v50, %v67
    %v70 = vrot.slane %v68, 1
    %v72 = vadd.f32 %v66, %v70
    %v73 = vstv %s62
    %v74 = vadd.f32 %v72, %v73
    %vm75 = vcmp.lt.f32.partialorder %v74, 0.0
    %v76 = vsel %vm75, 0.2, 1.0
    %v77 = vmul.f32 %v76, %v74
    %v78 = vstv %s60
    %v79 = vmul.f32 %v78, %v77
    %v80 = vadd.f32 %v50, %v79
    %v81 = vstv %s61
    %v82 = vmul.f32 %v81, %v77
    %v84 = vrot.slane %v82, 7
    %v86 = vadd.f32 %v50, %v84
    %v87 = vstv %s64
    %v88 = vstv %s63
    %v89 = vsel %vm75, %v87, %v88
    %v90 = vadd.f32 %v89, 0.0
    %s91 = sld [smem:[#allocation7 + $0x80]]
    %s92 = sld [smem:[#allocation7 + $0x81]]
    %s93 = sld [smem:[#allocation7 + $0x82]]
    %s94 = sld [smem:[#allocation7 + $0x83]]
    %s95 = sld [smem:[#allocation7 + $0x84]]
    %s96 = sld [smem:[#allocation7 + $0x85]]
    %s97 = sld [smem:[#allocation7 + $0x86]]
    %v98 = vstv %s91
    %v99 = vmul.f32 %v80, %v98
    %v100 = vstv %s92
    %v101 = vmul.f32 %v86, %v100
    %v103 = vrot.slane %v101, 1
    %v105 = vadd.f32 %v99, %v103
    %v106 = vstv %s95
    %v107 = vadd.f32 %v105, %v106
    %vm108 = vcmp.lt.f32.partialorder %v107, 0.0
    %v109 = vsel %vm108, 0.2, 1.0
    %v110 = vmul.f32 %v109, %v107
    %v111 = vstv %s93
    %v112 = vmul.f32 %v111, %v110
    %v113 = vadd.f32 %v80, %v112
    %v114 = vstv %s94
    %v115 = vmul.f32 %v114, %v110
    %v117 = vrot.slane %v115, 7
    %v119 = vadd.f32 %v86, %v117
    %v120 = vstv %s97
    %v121 = vstv %s96
    %v122 = vsel %vm108, %v120, %v121
    %v123 = vadd.f32 %v90, %v122
    %s124 = sld [smem:[#allocation7 + $0x100]]
    %s125 = sld [smem:[#allocation7 + $0x101]]
    %s126 = sld [smem:[#allocation7 + $0x102]]
    %s127 = sld [smem:[#allocation7 + $0x103]]
    %s128 = sld [smem:[#allocation7 + $0x104]]
    %s129 = sld [smem:[#allocation7 + $0x105]]
    %s130 = sld [smem:[#allocation7 + $0x106]]
    %v131 = vstv %s124
    %v132 = vmul.f32 %v113, %v131
    %v133 = vstv %s125
    %v134 = vmul.f32 %v119, %v133
    %v136 = vrot.slane %v134, 1
    %v138 = vadd.f32 %v132, %v136
    %v139 = vstv %s128
    %v140 = vadd.f32 %v138, %v139
    %vm141 = vcmp.lt.f32.partialorder %v140, 0.0
    %v142 = vsel %vm141, 0.2, 1.0
    %v143 = vmul.f32 %v142, %v140
    %v144 = vstv %s126
    %v145 = vmul.f32 %v144, %v143
    %v146 = vadd.f32 %v113, %v145
    %v147 = vstv %s127
    %v148 = vmul.f32 %v147, %v143
    %v150 = vrot.slane %v148, 7
    %v152 = vadd.f32 %v119, %v150
    %v153 = vstv %s130
    %v154 = vstv %s129
    %v155 = vsel %vm141, %v153, %v154
    %v156 = vadd.f32 %v123, %v155
    %s157 = sld [smem:[#allocation8]]
    %s158 = sld [smem:[#allocation8 + $0x80]]
    %vm159 = vcmask 57344
    %v160 = vsel %vm159, %v146, inf
    %161 = vmin.xlane.f32.xlu0 %v160
    %v162 = vpop.xlane.xlu0 %161
    %v163 = vsel %vm159, %v146, -inf
    %164 = vmax.xlane.f32.xlu0 %v163
    %v165 = vpop.xlane.xlu0 %164
    %v166 = vsub.f32 %v165, %v162
    %v167 = vrcp.pop %v166
    %v168 = vsub.f32 %v146, %v162
    %v169 = vmul.f32 %v168, %v167
    %v170 = vstv %s157
    %v171 = vmul.f32 %v170, %v169
    %v172 = vstv %s158
    %v173 = vadd.f32 %v171, %v172
    %v174 = vmul.f32 %v170, %v167
    %v175 = vlog2.pop %v174
    %v176 = vmul.f32 %v175, 0.6931472
    %v177 = vadd.f32 %v176, 0.0
    %s178 = sld [smem:[#allocation8 + $0x1]]
    %s179 = sld [smem:[#allocation8 + $0x81]]
    %vm180 = vcmask 58369
    %v181 = vsel %vm180, %v152, inf
    %182 = vmin.xlane.f32.xlu0 %v181
    %v183 = vpop.xlane.xlu0 %182
    %v184 = vsel %vm180, %v152, -inf
    %185 = vmax.xlane.f32.xlu0 %v184
    %v186 = vpop.xlane.xlu0 %185
    %v187 = vsub.f32 %v186, %v183
    %v188 = vrcp.pop %v187
    %v189 = vsub.f32 %v152, %v183
    %v190 = vmul.f32 %v189, %v188
    %v191 = vstv %s178
    %v192 = vmul.f32 %v191, %v190
    %v193 = vstv %s179
    %v194 = vadd.f32 %v192, %v193
    %v195 = vmul.f32 %v191, %v188
    %v196 = vlog2.pop %v195
    %v197 = vmul.f32 %v196, 0.6931472
    %v199 = vrot.slane %v197, 1
    %v201 = vadd.f32 %v177, %v199
    %s202 = sld [smem:[#allocation7 + $0x107]]
    %s203 = sld [smem:[#allocation7 + $0x108]]
    %v204 = vmul.f32 %v50, %v131
    %v205 = vmul.f32 %v50, %v133
    %v207 = vrot.slane %v205, 1
    %v209 = vadd.f32 %v204, %v207
    %v210 = vadd.f32 %v209, %v139
    %vm211 = vcmp.lt.f32.partialorder %v210, 0.0
    %v212 = vsel %vm211, 0.2, 1.0
    %v213 = vstv %s203
    %v214 = vstv %s202
    %v215 = vsel %vm211, %v213, %v214
    %v216 = vmul.f32 %v212, %v210
    %v217 = vmul.f32 %v216, %v215
    %v218 = vmul.f32 %v144, %v217
    %v219 = vsub.f32 %v50, %v218
    %v220 = vmul.f32 %v147, %v217
    %v222 = vrot.slane %v220, 7
    %v224 = vsub.f32 %v50, %v222
    %v225 = vsel %vm211, %v153, %v154
    %v226 = vsub.f32 0.0, %v225
    %s227 = sld [smem:[#allocation7 + $0x87]]
    %s228 = sld [smem:[#allocation7 + $0x88]]
    %v229 = vmul.f32 %v219, %v98
    %v230 = vmul.f32 %v224, %v100
    %v232 = vrot.slane %v230, 1
    %v234 = vadd.f32 %v229, %v232
    %v235 = vadd.f32 %v234, %v106
    %vm236 = vcmp.lt.f32.partialorder %v235, 0.0
    %v237 = vsel %vm236, 0.2, 1.0
    %v238 = vstv %s228
    %v239 = vstv %s227
    %v240 = vsel %vm236, %v238, %v239
    %v241 = vmul.f32 %v237, %v235
    %v242 = vmul.f32 %v241, %v240
    %v243 = vmul.f32 %v111, %v242
    %v244 = vsub.f32 %v219, %v243
    %v245 = vmul.f32 %v114, %v242
    %v247 = vrot.slane %v245, 7
    %v249 = vsub.f32 %v224, %v247
    %v250 = vsel %vm236, %v120, %v121
    %v251 = vsub.f32 %v226, %v250
    %s252 = sld [smem:[#allocation7 + $0x7]]
    %s253 = sld [smem:[#allocation7 + $0x8]]
    %v254 = vmul.f32 %v244, %v65
    %v255 = vmul.f32 %v249, %v67
    %v257 = vrot.slane %v255, 1
    %v259 = vadd.f32 %v254, %v257
    %v260 = vadd.f32 %v259, %v73
    %vm261 = vcmp.lt.f32.partialorder %v260, 0.0
    %v262 = vsel %vm261, 0.2, 1.0
    %v263 = vstv %s253
    %v264 = vstv %s252
    %v265 = vsel %vm261, %v263, %v264
    %v266 = vmul.f32 %v262, %v260
    %v267 = vmul.f32 %v266, %v265
    %v268 = vmul.f32 %v78, %v267
    %v269 = vsub.f32 %v244, %v268
    %v270 = vmul.f32 %v81, %v267
    %v272 = vrot.slane %v270, 7
    %v274 = vsub.f32 %v249, %v272
    %v275 = vsel %vm261, %v87, %v88
    %v276 = vsub.f32 %v251, %v275
    %v277 = vmul.f32 %v269, %v269
    %v278 = vmul.f32 %v274, %v274
    %v280 = vrot.slane %v278, 1
    %v282 = vadd.f32 %v277, %v280
    %v283 = vmul.f32 %v282, 0.5
    %v284 = vsub.f32 -1.837877, %v283
    %v285 = vadd.f32 %v276, %v284
    %v286 = vsel %vm159, %v285, 0.0
    %287 = vadd.xlane.f32.xlu0 %v286
    %v288 = vpop.xlane.xlu0 %287
    %v289 = vsub.f32 0.0, %v288
    %v290 = vrcp.pop 8.0
    %v291 = vmul.f32 %v289, %v290
    %s292 = sadd.f32 %s158, %s157
    %s293 = sadd.f32 %s179, %s178
    %vm294 = vcmp.ge.f32.partialorder %v269, %v172
    %v295 = vstv %s292
    %vm296 = vcmp.le.f32.partialorder %v269, %v295
    %vm297 = vmand %vm294, %vm296
    %vm298 = vcmp.ge.f32.partialorder %v274, %v193
    %v299 = vstv %s293
    %vm300 = vcmp.le.f32.partialorder %v274, %v299
    %vm301 = vmand %vm298, %vm300
    %v302 = vsel %vm301, 1, 0
    %v303 = vrot.slane %v302, 1
    %vm304 = vcmp.ne.s32.totalorder %v303, 0
    %vm305 = vmand %vm297, %vm304
    %v306 = vsel %vm305, 1, 0
    %v307 = vcvt.s32.f32 %v306
    %v308 = vsel %vm159, %v307, 0.0
    %309 = vadd.xlane.f32.xlu0 %v308
    %v310 = vpop.xlane.xlu0 %309
    %v311 = vsel %vm305, %v284, 0.0
    %v312 = vsel %vm159, %v311, 0.0
    %313 = vadd.xlane.f32.xlu0 %v312
    %v314 = vpop.xlane.xlu0 %313
    %v315 = vmax.f32 %v310, 1.0
    %v316 = vrcp.pop %v315
    %v317 = vmul.f32 %v314, %v316
    %vm318 = vcmp.gt.f32.partialorder %v310, 0.0
    %v319 = vsub.f32 0.0, %v317
    %v320 = vadd.f32 %v319, %v291
    %v321 = vsel %vm318, %v320, 0.0
    %322 = vst.msk [vmem:[#allocation9] sm:$0x1] %vm159, %v146
    %323 = vst.msk [vmem:[#allocation9 + $0x2] sm:$0x1] %vm159, %v173
    %324 = vst.msk [vmem:[#allocation9] sm:$0x2] %vm180, %v152
    %325 = vst.msk [vmem:[#allocation9 + $0x2] sm:$0x2] %vm180, %v194
    %326 = vst.msk [vmem:[#allocation9 + $0x4] sm:$0x1] %vm159, %v57
    %327 = vst.msk [vmem:[#allocation9 + $0x5] sm:$0x1] %vm159, %v156
    %329 = vset.pattern.permute.xlu0 0
    %330 = vperm.xlu0 %329, %v201
    %v331 = vpop.permute.xlu0 %330
    %333 = vst.msk [vmem:[#allocation9 + $0x6] sm:$0x1] %vm159, %v331
    %334 = vst.msk [vmem:[#allocation9 + $0x7] sm:$0x1] %vm159, %v321
    // Predicated region
    $region26: #{tpu_custom_call.1} parent=1 // pred_check
      _
    $region27: #{tpu_custom_call.1} parent=1 // pred_check_branch
      %336 = sbr.rel (0) target = $region29
    $region28: #{tpu_custom_call.1} parent=1 // pred_region
      %s338 = ssub.s32 128, 128
      %339 = vsyncadd [#allocation4], %s338
      %s341 = sshll.u32 [#allocation9], 4
      %s342 = int_to_ptr.vmem [resolvable:$true] %s341
      %344 = dma.vmem_to_hbm [thread:$0]  %s342, 128, %s3, [#allocation4]
    $region29: #{tpu_custom_call.1} parent=1 // pred_fallthru
      _
    // Predicated region
    $region30: #{tpu_custom_call.1} parent=1 // pred_check
      _
    $region31: #{tpu_custom_call.1} parent=1 // pred_check_branch
      %346 = sbr.rel (0) target = $region33
    $region32: #{tpu_custom_call.1} parent=1 // pred_region
      %347 = dma.done [#allocation4], 128
    $region33: #{tpu_custom_call.1} parent=1 // pred_fallthru
      _
    %348 = vsyncpa [#allocation3], 1
    %349 = vsyncpa [#allocation4], 1
    %350 = vsyncpa [#allocation5], 1
    %351 = vsyncpa [#allocation6], 1

</llo_original>
